<compile_context>
chip_gen: v5e
topology: v5e:2x2
jax: 0.10.0
libtpu: 0.0.40
codegen_flags: <defaults>
</compile_context>

<pallas_src>
import jax
import jax.numpy as jnp
from jax.experimental import pallas as pl
from jax.experimental.pallas import tpu as pltpu

_NORMALIZE_CONSTANTS = {
    "imagenet": ((0.485, 0.456, 0.406), (0.229, 0.224, 0.225)),
    "cifar100": ((0.4914, 0.4822, 0.4465), (0.2023, 0.1994, 0.201)),
    "inc": ((0.5, 0.5, 0.5), (0.5, 0.5, 0.5)),
    "tensorflow": ((0.5, 0.5, 0.5), (0.5, 0.5, 0.5)),  # x*2-1 == (x-0.5)/0.5
}

_MiB = 1024 * 1024


def _target_bytes_per_buffer() -> int:
    """Per-input-buffer tile budget, adapted to the chip's VMEM capacity."""
    vmem = 128 * _MiB
    try:
        info = pltpu.get_tpu_info()
        vmem = int(getattr(info, "vmem_capacity_bytes", vmem)) or vmem
    except Exception:
        pass
    # v7x-class (64 MiB VMEM/TC, ~3.2 TB/s HBM): bigger tiles amortize the
    # ~0.35us/step overhead; 2 bufs x (in + out) x 8 MiB = 32 MiB << 64 MiB.
    if vmem <= 64 * _MiB:
        return 8 * _MiB
    # v5e / v6e (128 MiB VMEM): 4 MiB/buffer, explicit vmem_limit set below.
    return 4 * _MiB


def _choose_tiles(rows: int, hw: int, dtype, target_bytes: int):
    """Pick (row_block, lane_block) with <= target_bytes per input buffer."""
    itemsize = jnp.dtype(dtype).itemsize
    sub = max(8, 32 // itemsize)          # sublane packing: 8 f32, 16 bf16, 32 i8

    # Lane budget computed against the *minimum* legal row tile (`sub` rows),
    # so the subsequent row-tile round-up can never overshoot target_bytes.
    lane_budget = max(128, ((target_bytes // (sub * itemsize)) // 128) * 128)

    if hw <= lane_budget:
        l_blk = hw                         # full-extent lane block (always legal)
    else:
        # Prefer the largest 128-multiple <= budget that divides hw evenly
        # (no ragged trailing tile / masked stores); else use the budget with
        # a padded tail (block_shape is 128-aligned, so still legal).
        l_blk = lane_budget
        if hw % 128 == 0:
            d = lane_budget
            while d >= 128:
                if hw % d == 0:
                    l_blk = d
                    break
                d -= 128

    # Row tile: fill the remaining per-buffer budget.
    max_rows = max(1, target_bytes // (l_blk * itemsize))
    if rows <= max_rows:
        r_blk = rows                       # full extent (legal for any rows)
    else:
        r_blk = max(sub, (max_rows // sub) * sub)

    # Guarantee >= 2 grid blocks so v7x's two TensorCores both get work
    # (negligible extra step on single-TC v5e/v6e for tiny inputs).
    if pl.cdiv(rows, r_blk) * pl.cdiv(hw, l_blk) == 1:
        if hw % 256 == 0 and l_blk >= 256:
            l_blk //= 2                    # still a multiple of 128
        elif rows >= 2 * sub:
            r_blk = (((rows + 1) // 2 + sub - 1) // sub) * sub

    return r_blk, l_blk


def _make_kernel(inv_std, bias, C: int, r_blk: int):
    """Build the kernel with compile-time per-channel constants baked in."""
    uniform = all(s == inv_std[0] for s in inv_std) and \
              all(b == bias[0] for b in bias)

    def kernel(x_ref, o_ref):
        xf = x_ref[...].astype(jnp.float32)
        if uniform:
            # inc / tensorflow: one scalar FMA per element.
            o_ref[...] = (xf * inv_std[0] + bias[0]).astype(o_ref.dtype)
        else:
            # Per-row (= per-channel) constants reconstructed in-kernel:
            # global row = grid_i * r_blk + local row; channel = row % C.
            rblk = x_ref.shape[0]
            row0 = pl.program_id(0) * r_blk
            row_ids = row0 + jax.lax.broadcasted_iota(jnp.int32, (rblk, 1), 0)
            ch = row_ids % C
            scale = jnp.full((rblk, 1), inv_std[0], jnp.float32)
            shift = jnp.full((rblk, 1), bias[0], jnp.float32)
            for c in range(1, C):
                m = ch == c
                scale = jnp.where(m, inv_std[c], scale)
                shift = jnp.where(m, bias[c], shift)
            o_ref[...] = (xf * scale + shift).astype(o_ref.dtype)

    return kernel


def normalize(x: jax.Array, dataset_name: str, donate_input: bool = False) -> jax.Array:
    assert dataset_name in _NORMALIZE_CONSTANTS, "check dataset_name"
    assert jnp.issubdtype(x.dtype, jnp.floating), (
        "normalize expects a floating-point image tensor")
    B, C, H, W = x.shape

    # 'tensorflow' / 'inc' are x*2-1 for ANY channel count; the named-dataset
    # constants are 3-channel and must match C.
    if dataset_name in ("inc", "tensorflow"):
        mean_t, std_t = (0.5,) * C, (0.5,) * C
    else:
        mean_t, std_t = _NORMALIZE_CONSTANTS[dataset_name]
        assert C == len(mean_t), "channel count must match normalization constants"

    # Affine constants (compile-time Python floats): out = x*inv_std - mean*inv_std.
    # (x*inv_std + bias differs from (x-mean)/std by ~1 ulp in f32.)
    inv_std = [1.0 / s for s in std_t]
    bias = [-m * s for m, s in zip(mean_t, inv_std)]

    rows, hw = B * C, H * W
    itemsize = jnp.dtype(x.dtype).itemsize

    # Lane-dense 2-D view; row r corresponds to channel (r % C).
    x2 = x.reshape(rows, hw)

    r_blk, l_blk = _choose_tiles(rows, hw, x.dtype, _target_bytes_per_buffer())
    grid = (pl.cdiv(rows, r_blk), pl.cdiv(hw, l_blk))

    # Explicit scoped-VMEM budget: double-buffered in + out tiles + slack.
    tile_bytes = r_blk * l_blk * itemsize
    vmem_limit = max(4 * tile_bytes + 4 * _MiB, 8 * _MiB)

    kernel = _make_kernel(inv_std, bias, C, r_blk)

    out2 = pl.pallas_call(
        kernel,
        out_shape=jax.ShapeDtypeStruct((rows, hw), x.dtype),
        grid=grid,
        in_specs=[pl.BlockSpec((r_blk, l_blk), lambda i, j: (i, j))],
        out_specs=pl.BlockSpec((r_blk, l_blk), lambda i, j: (i, j)),
        compiler_params=pltpu.CompilerParams(
            dimension_semantics=("parallel", "parallel"),
            vmem_limit_bytes=int(vmem_limit),
        ),
        cost_estimate=pl.CostEstimate(
            flops=2 * rows * hw,
            bytes_accessed=2 * rows * hw * itemsize,
            transcendentals=0,
        ),
        input_output_aliases={0: 0} if donate_input else {},
    )(x2)

    return out2.reshape(B, C, H, W)


def _reference(x, dataset_name):
    mean_t, std_t = _NORMALIZE_CONSTANTS[dataset_name]
    if dataset_name == "tensorflow":
        return (x.astype(jnp.float32) * 2.0 - 1.0).astype(x.dtype)
    mean = jnp.asarray(mean_t, dtype=jnp.float32).reshape(1, -1, 1, 1)
    std = jnp.asarray(std_t, dtype=jnp.float32).reshape(1, -1, 1, 1)
    return ((x.astype(jnp.float32) - mean) / std).astype(x.dtype)


if __name__ == "__main__":
    key = jax.random.PRNGKey(0)
    B, C, H, W = 2, 3, 16, 16  # the module's named-dataset constants are 3-channel
    x = jax.random.uniform(key, (B, C, H, W), dtype=jnp.float32)

    ok = True
    for mode in ["imagenet", "cifar100", "inc", "tensorflow"]:
        out = normalize(x, mode)
        jax.block_until_ready(out)
        ref = _reference(x, mode)
        if not jnp.allclose(out, ref, atol=1e-5, rtol=1e-5):
            ok = False
            print(f"MISMATCH in mode {mode} (f32)")

    # bf16 path (exercises sublane packing / f32 upcast-downcast in-kernel).
    x_bf16 = x.astype(jnp.bfloat16)
    out_bf = normalize(x_bf16, "imagenet")
    jax.block_until_ready(out_bf)
    ref_bf = _reference(x_bf16, "imagenet")
    if not jnp.allclose(out_bf.astype(jnp.float32),
                        ref_bf.astype(jnp.float32), atol=3e-2, rtol=3e-2):
        ok = False
        print("MISMATCH in mode imagenet (bf16)")

    if ok:
        print("KERNEL_OK")
</pallas_src>

<mosaic_0001>
module attributes {stable_mosaic.version = 11 : i64} {
  func.func @kernel(%arg0: i32, %arg1: i32, %arg2: memref<6x128xf32, #tpu.memory_space<vmem>>, %arg3: memref<6x128xf32, #tpu.memory_space<vmem>>) attributes {dimension_semantics = [#tpu.dimension_semantics<parallel>, #tpu.dimension_semantics<parallel>], iteration_bounds = array<i64: 1, 2>, scalar_prefetch = 0 : i64, scratch_operands = 0 : i64, tpu.core_type = #tpu.core_type<tc>, window_params = [{transform_indices = @transform_0, window_bounds = array<i64: 6, 128>}, {transform_indices = @transform_1, window_bounds = array<i64: 6, 128>}]} {
    %c0 = arith.constant 0 : index
    %c0_0 = arith.constant 0 : index
    %0 = vector.load %arg2[%c0, %c0_0] : memref<6x128xf32, #tpu.memory_space<vmem>>, vector<6x128xf32>
    %c6_i32 = arith.constant 6 : i32
    %1 = arith.muli %arg0, %c6_i32 : i32
    %2 = tpu.iota {dimensions = array<i32: 0>} : vector<6x1xi32>
    %3 = vector.broadcast %1 : i32 to vector<6x1xi32>
    %4 = arith.addi %3, %2 : vector<6x1xi32>
    %c3_i32 = arith.constant 3 : i32
    %c0_i32 = arith.constant 0 : i32
    %5 = arith.cmpi eq, %c3_i32, %c0_i32 : i32
    %c1_i32 = arith.constant 1 : i32
    %6 = arith.select %5, %c1_i32, %c3_i32 : i32
    %7 = vector.broadcast %6 : i32 to vector<6x1xi32>
    %8 = arith.remsi %4, %7 : vector<6x1xi32>
    %c0_i32_1 = arith.constant 0 : i32
    %9 = vector.broadcast %c0_i32_1 : i32 to vector<6x1xi32>
    %10 = arith.cmpi ne, %8, %9 : vector<6x1xi32>
    %c0_i32_2 = arith.constant 0 : i32
    %11 = vector.broadcast %c0_i32_2 : i32 to vector<6x1xi32>
    %12 = arith.cmpi slt, %8, %11 : vector<6x1xi32>
    %c0_i32_3 = arith.constant 0 : i32
    %13 = arith.cmpi slt, %6, %c0_i32_3 : i32
    %14 = vector.broadcast %13 : i1 to vector<6x1xi1>
    %15 = vector.broadcast %14 : vector<6x1xi1> to vector<6x1xi1>
    %16 = arith.xori %12, %15 : vector<6x1xi1>
    %17 = arith.andi %16, %10 : vector<6x1xi1>
    %18 = vector.broadcast %6 : i32 to vector<6x1xi32>
    %19 = arith.addi %8, %18 : vector<6x1xi32>
    %20 = arith.select %17, %19, %8 : vector<6x1xi1>, vector<6x1xi32>
    %cst = arith.constant 4.36681223 : f32
    %21 = vector.broadcast %cst : f32 to vector<6x1xf32>
    %cst_4 = arith.constant -2.11790395 : f32
    %22 = vector.broadcast %cst_4 : f32 to vector<6x1xf32>
    %c1_i32_5 = arith.constant 1 : i32
    %23 = vector.broadcast %c1_i32_5 : i32 to vector<6x1xi32>
    %24 = arith.cmpi eq, %20, %23 : vector<6x1xi32>
    %cst_6 = arith.constant 4.46428585 : f32
    %25 = vector.broadcast %cst_6 : f32 to vector<6x1xf32>
    %26 = arith.select %24, %25, %21 : vector<6x1xi1>, vector<6x1xf32>
    %cst_7 = arith.constant -2.03571439 : f32
    %27 = vector.broadcast %cst_7 : f32 to vector<6x1xf32>
    %28 = arith.select %24, %27, %22 : vector<6x1xi1>, vector<6x1xf32>
    %c2_i32 = arith.constant 2 : i32
    %29 = vector.broadcast %c2_i32 : i32 to vector<6x1xi32>
    %30 = arith.cmpi eq, %20, %29 : vector<6x1xi32>
    %cst_8 = arith.constant 4.44444466 : f32
    %31 = vector.broadcast %cst_8 : f32 to vector<6x1xf32>
    %32 = arith.select %30, %31, %26 : vector<6x1xi1>, vector<6x1xf32>
    %cst_9 = arith.constant -1.80444443 : f32
    %33 = vector.broadcast %cst_9 : f32 to vector<6x1xf32>
    %34 = arith.select %30, %33, %28 : vector<6x1xi1>, vector<6x1xf32>
    %35 = vector.broadcast %32 : vector<6x1xf32> to vector<6x128xf32>
    %36 = arith.mulf %0, %35 : vector<6x128xf32>
    %37 = vector.broadcast %34 : vector<6x1xf32> to vector<6x128xf32>
    %38 = arith.addf %36, %37 : vector<6x128xf32>
    %c0_10 = arith.constant 0 : index
    %c0_11 = arith.constant 0 : index
    %39 = vector.load %arg3[%c0_10, %c0_11] : memref<6x128xf32, #tpu.memory_space<vmem>>, vector<6x128xf32>
    tpu.vector_store %arg3[%c0_10, %c0_11], %38 {strides = array<i32>} : memref<6x128xf32, #tpu.memory_space<vmem>>, vector<6x128xf32>,
    return
  }
  func.func @transform_0(%arg0: i32, %arg1: i32) -> (i32, i32) {
    %c0_i32 = arith.constant 0 : i32
    return %arg0, %arg1 : i32, i32
  }
  func.func @transform_1(%arg0: i32, %arg1: i32) -> (i32, i32) {
    %c0_i32 = arith.constant 0 : i32
    return %arg0, %arg1 : i32, i32
  }
}

</mosaic_0001>

<llo_original>
// kernel: tpu_custom_call.1
$region0: #{tpu_custom_call.1}
  #allocation0 [shape = 'u32[]', space=smem, size = 0x4, offset = 0x4, fixed_abs, tag = 'smem constant byte address 0x4 - core index']
  #allocation1 [shape = 'u32[72,128]{1,0:T(1,128)}', space=vmem, size = 0x9000, scoped, tag = 'internal scratch']
  %s0 = inlined_call_operand.hbm [shape: f32[6,256], index: 0, kind: input, shape index: {}]
  %s1 = inlined_call_operand.hbm [shape: f32[6,256], index: 1, kind: output, shape index: {}]
  %s2 = sld [smem:[#allocation0]]
  $region41: #{tpu_custom_call.1} parent=0
    _
  %s4 = ssub.s32 1, %s2
  %s5 = scalar_select 0, %s4, %s2
  $region1: #{tpu_custom_call.1} parent=0
    #allocation2 [shape = 'u8[8192]{0}', space=vmem, size = 0x2000, scoped, tag = 'input window, operand 0']
    #allocation3 [shape = 's32[2]{0}', space=sflag, size = 0x8, scoped, tag = 'scoped memory for tpu_custom_call.1']
    #allocation4 [shape = 's32[2]{0}', space=sflag, size = 0x8, scoped, tag = 'scoped memory for tpu_custom_call.1']
    #allocation5 [shape = 'u8[8192]{0}', space=vmem, size = 0x2000, scoped, tag = 'output window, operand 0']
    %6 = vsyncpa [#allocation3], 0
    %s7 = scalar_lea.sflag [#allocation3], 1
    %8 = vsyncpa %s7, 0
    %9 = vsyncpa [#allocation4], 0
    %s10 = scalar_lea.sflag [#allocation4], 1
    %11 = vsyncpa %s10, 0
    loop: start=0, step=1, limit=4
    $region2: #{tpu_custom_call.1} parent=1 // loop_pre_header
      _
    $region3: #{tpu_custom_call.1} parent=1 // loop_header
      %s13 = sphi 0, %s17
      %p14 = scmp.ge.s32.totalorder %s13, 4
      %s20 = sphi 0, %s32
      %s21 = sphi 0, %s28
      %s22 = sphi 0, %s20
      %s23 = sphi 0, %s21
      %s24 = sphi 0, %s22
      %s25 = sphi 0, %s23
      %s37 = sphi 0, %s39
      %s40 = sphi 0, %s37
      %s41 = sphi 0, %s40
      %s57 = sphi 0, %s41
      %s65 = sphi 0, %s67
      %s68 = sphi 0, %s65
      %s69 = sphi 0, %s68
      %s85 = sphi 0, %s69
    $region4: #{tpu_custom_call.1} parent=1 // loop_header_branch
      %16 = sbr.rel (%p14) target = $region8
    $region5: #{tpu_custom_call.1} parent=1 // loop_body
      %s18 = ssub.s32 %s13, 1
      %s19 = ssub.s32 %s13, 2
      %s26 = sadd.s32 1, %s21
      %p27 = scmp.ge.s32.totalorder %s26, 2
      %s28 = scalar_select %p27, 0, %s26
      %s29 = sadd.s32 1, %s20
      %s30 = scalar_select %p27, %s29, %s20
      %p31 = scmp.ge.s32.totalorder %s30, 1
      %s32 = scalar_select %p31, 0, %s30
      %s33 = ssub.s32 %s20, %s32
      %s34 = ssub.s32 %s21, %s28
      %s35 = sor.u32 %s33, %s34
      %p36 = scmp.eq.s32.totalorder %s35, 0
      %s38 = sadd.s32 %s37, 1
      %s39 = scalar_select %p36, %s37, %s38
      %p42 = pneg %p36
      %p43 = scmp.eq.s32.totalorder %s13, 1
      %p44 = por %p42, %p43
      %p45 = scmp.ne.s32.totalorder %s37, %s40
      %p46 = scmp.eq.s32.totalorder %s13, 0
      %p47 = por %p45, %p46
      %p48 = scmp.ne.s32.totalorder %s37, %s40
      %p49 = scmp.eq.s32.totalorder %s18, 1
      %p50 = por %p48, %p49
      %p51 = scmp.ne.s32.totalorder %s40, %s41
      %p52 = scmp.eq.s32.totalorder %s18, 0
      %p53 = por %p51, %p52
      %p54 = scmp.ne.s32.totalorder %s40, %s41
      %p55 = scmp.eq.s32.totalorder %s19, 1
      %p56 = por %p54, %p55
      %p58 = scmp.ne.s32.totalorder %s41, %s57
      %p59 = scmp.eq.s32.totalorder %s19, 0
      %p60 = por %p58, %p59
      %s61 = ssub.s32 %s20, %s32
      %s62 = ssub.s32 %s21, %s28
      %s63 = sor.u32 %s61, %s62
      %p64 = scmp.eq.s32.totalorder %s63, 0
      %s66 = sadd.s32 %s65, 1
      %s67 = scalar_select %p64, %s65, %s66
      %p70 = pneg %p64
      %p71 = scmp.eq.s32.totalorder %s13, 1
      %p72 = por %p70, %p71
      %p73 = scmp.ne.s32.totalorder %s65, %s68
      %p74 = scmp.eq.s32.totalorder %s13, 0
      %p75 = por %p73, %p74
      %p76 = scmp.ne.s32.totalorder %s65, %s68
      %p77 = scmp.eq.s32.totalorder %s18, 1
      %p78 = por %p76, %p77
      %p79 = scmp.ne.s32.totalorder %s68, %s69
      %p80 = scmp.eq.s32.totalorder %s18, 0
      %p81 = por %p79, %p80
      %p82 = scmp.ne.s32.totalorder %s68, %s69
      %p83 = scmp.eq.s32.totalorder %s19, 1
      %p84 = por %p82, %p83
      %p86 = scmp.ne.s32.totalorder %s69, %s85
      %p87 = scmp.eq.s32.totalorder %s19, 0
      %p88 = por %p86, %p87
      %p89 = scmp.le.s32.totalorder 1, %s13
      %p90 = scmp.lt.s32.totalorder %s13, 3
      %p91 = pnand %p89, %p90
      %p92 = pneg %p91
      // Predicated region
      $region9: #{tpu_custom_call.1} parent=5 // pred_check
        _
      $region10: #{tpu_custom_call.1} parent=5 // pred_check_branch
        %94 = sbr.rel (%p91) target = $region12
      $region11: #{tpu_custom_call.1} parent=5 // pred_region
        %s95 = ssub.s32 %s13, 1
      $region12: #{tpu_custom_call.1} parent=5 // pred_fallthru
        _
      %p96 = scmp.lt.s32.totalorder %s13, 2
      // Predicated region
      $region13: #{tpu_custom_call.1} parent=5 // pred_check
        %p97 = pneg %p96
      $region14: #{tpu_custom_call.1} parent=5 // pred_check_branch
        %99 = sbr.rel (%p97) target = $region16
      $region15: #{tpu_custom_call.1} parent=5 // pred_region
        // Predicated region
        $region17: #{tpu_custom_call.1} parent=15 // pred_check
          %p100 = pneg %p47
        $region18: #{tpu_custom_call.1} parent=15 // pred_check_branch
          %102 = sbr.rel (%p100) target = $region20
        $region19: #{tpu_custom_call.1} parent=15 // pred_region
          %s103 = sand.u32 %s37, 1
          %s104 = scalar_lea.sflag [#allocation3], %s103
          %s105 = sand.u32 %s37, 1
          %s106 = smul.addr %s105, 8
          %s107 = scalar_lea.vmem [#allocation2], %s106
          %109 = vsyncadd %s104, 0
          %s110 = smul.addr %s20, 2
          %s111 = sadd.s32 %s21, %s110
          %s112 = smul.addr %s111, 8
          %s113 = scalar_lea.hbm %s0, %s112
          %s115 = sshll.u32 %s113, 4
          %s116 = int_to_ptr.hbm [resolvable:$true] %s115
          %s117 = sshll.u32 %s107, 4
          %s118 = int_to_ptr.vmem [resolvable:$true] %s117
          %120 = dma.hbm_to_vmem [thread:$0]  %s116, 128, %s118, %s104
        $region20: #{tpu_custom_call.1} parent=15 // pred_fallthru
          _
      $region16: #{tpu_custom_call.1} parent=5 // pred_fallthru
        _
      %p121 = scmp.le.s32.totalorder 1, %s13
      %p122 = scmp.lt.s32.totalorder %s13, 3
      %p123 = pnand %p121, %p122
      %p124 = pneg %p123
      // Predicated region
      $region21: #{tpu_custom_call.1} parent=5 // pred_check
        _
      $region22: #{tpu_custom_call.1} parent=5 // pred_check_branch
        %126 = sbr.rel (%p123) target = $region24
      $region23: #{tpu_custom_call.1} parent=5 // pred_region
        %s127 = ssub.s32 %s13, 1
        %s128 = sand.u32 %s40, 1
        %s129 = scalar_lea.sflag [#allocation3], %s128
        %s130 = sand.u32 %s40, 1
        %s131 = smul.addr %s130, 8
        %s132 = scalar_lea.vmem [#allocation2], %s131
        // Predicated region
        $region25: #{tpu_custom_call.1} parent=23 // pred_check
          %p133 = pneg %p53
        $region26: #{tpu_custom_call.1} parent=23 // pred_check_branch
          %135 = sbr.rel (%p133) target = $region28
        $region27: #{tpu_custom_call.1} parent=23 // pred_region
          %137 = dma.done %s129, 128
        $region28: #{tpu_custom_call.1} parent=23 // pred_fallthru
          _
        %s138 = sand.u32 %s40, 1
        %s139 = scalar_lea.sflag [#allocation3], %s138
        %s140 = sand.u32 %s40, 1
        %s141 = smul.addr %s140, 8
        %s142 = scalar_lea.vmem [#allocation2], %s141
        %p143 = pneg %p53
        %p144 = pneg %p50
        %p145 = pneg %p81
        %p146 = pneg %p78
        %s147 = sand.u32 %s68, 1
        %s148 = scalar_lea.sflag [#allocation4], %s147
        %s149 = sand.u32 %s68, 1
        %s150 = smul.addr %s149, 8
        %s151 = scalar_lea.vmem [#allocation5], %s150
        %v152 = vld [vmem:[%s132] sm:$0x3f]
        %s153 = smul.u32 %s22, 6
        %v154 = vlaneseq
        %v155 = vshrl.u32 %v154, 7
        %v156 = vstv %s153
        %v157 = vadd.s32 %v156, %v155
        %vm158 = vcmp.lt.s32.totalorder %v157, 0
        %v159 = vsub.s32 0, %v157
        %v160 = vsel %vm158, %v159, %v157
        %v161 = vand.u32 %v160, 65535
        %v162 = vshrl.u32 %v160, 16
        %v164 = vmul.u32 %v161, 43691
        %v165 = vmul.u32 %v161, 43690
        %v166 = vmul.u32 %v162, 43691
        %v167 = vmul.u32 %v162, 43690
        %v168 = vshll.u32 %v165, 16
        %v169 = vshrl.u32 %v165, 16
        %v170 = vshll.u32 %v166, 16
        %v171 = vshrl.u32 %v166, 16
        %vm172 = vc.u32 %v164, %v168
        %v173 = vsel %vm172, 1, 0
        %v174 = vadd.s32 %v164, %v168
        %v175 = vadd.s32 %v167, %v173
        %vm176 = vc.u32 %v174, %v170
        %v177 = vsel %vm176, 1, 0
        %v178 = vadd.s32 %v174, %v170
        %v179 = vadd.s32 %v175, %v177
        %v180 = vadd.s32 %v179, %v169
        %v181 = vadd.s32 %v180, %v171
        %v182 = vshrl.u32 %v181, 1
        %v183 = vmul.u32 %v182, 3
        %v184 = vsub.s32 %v160, %v183
        %v185 = vsub.s32 0, %v184
        %v186 = vsel %vm158, %v185, %v184
        %vm187 = vcmp.ne.s32.totalorder %v186, 0
        %vm188 = vcmp.lt.s32.totalorder %v186, 0
        %vm189 = vmand %vm188, %vm187
        %v190 = vadd.s32 %v186, 3
        %v191 = vsel %vm189, %v190, %v186
        %vm192 = vcmp.eq.s32.totalorder %v191, 1
        %v193 = vsel %vm192, 4.464286, 4.366812
        %v194 = vsel %vm192, -2.0357144, -2.117904
        %vm195 = vcmp.eq.s32.totalorder %v191, 2
        %v196 = vsel %vm195, 4.4444447, %v193
        %v197 = vsel %vm195, -1.8044444, %v194
        %v198 = vmul.f32 %v152, %v196
        %v199 = vadd.f32 %v198, %v197
        %200 = vst [vmem:[%s151] sm:$0x3f] %v199
        %s201 = sand.u32 %s68, 1
        %s202 = scalar_lea.sflag [#allocation4], %s201
        %s203 = sand.u32 %s68, 1
        %s204 = smul.addr %s203, 8
        %s205 = scalar_lea.vmem [#allocation5], %s204
        // Predicated region
        $region29: #{tpu_custom_call.1} parent=23 // pred_check
          %p206 = pneg %p78
        $region30: #{tpu_custom_call.1} parent=23 // pred_check_branch
          %208 = sbr.rel (%p206) target = $region32
        $region31: #{tpu_custom_call.1} parent=23 // pred_region
          %210 = vsyncadd %s202, 0
          %s211 = smul.addr %s22, 2
          %s212 = sadd.s32 %s23, %s211
          %s213 = smul.addr %s212, 8
          %s214 = scalar_lea.hbm %s1, %s213
          %s216 = sshll.u32 %s205, 4
          %s217 = int_to_ptr.vmem [resolvable:$true] %s216
          %s218 = sshll.u32 %s214, 4
          %s219 = int_to_ptr.hbm [resolvable:$true] %s218
          %221 = dma.vmem_to_hbm [thread:$0]  %s217, 128, %s219, %s202
        $region32: #{tpu_custom_call.1} parent=23 // pred_fallthru
          _
      $region24: #{tpu_custom_call.1} parent=5 // pred_fallthru
        _
      %p222 = scmp.le.s32.totalorder 2, %s13
      // Predicated region
      $region33: #{tpu_custom_call.1} parent=5 // pred_check
        %p223 = pneg %p222
      $region34: #{tpu_custom_call.1} parent=5 // pred_check_branch
        %225 = sbr.rel (%p223) target = $region36
      $region35: #{tpu_custom_call.1} parent=5 // pred_region
        %s226 = ssub.s32 %s13, 2
        // Predicated region
        $region37: #{tpu_custom_call.1} parent=35 // pred_check
          %p227 = pneg %p84
        $region38: #{tpu_custom_call.1} parent=35 // pred_check_branch
          %229 = sbr.rel (%p227) target = $region40
        $region39: #{tpu_custom_call.1} parent=35 // pred_region
          %s230 = sand.u32 %s69, 1
          %s231 = scalar_lea.sflag [#allocation4], %s230
          %s232 = sand.u32 %s69, 1
          %s233 = smul.addr %s232, 8
          %s234 = scalar_lea.vmem [#allocation5], %s233
          %236 = dma.done %s231, 128
        $region40: #{tpu_custom_call.1} parent=35 // pred_fallthru
          _
      $region36: #{tpu_custom_call.1} parent=5 // pred_fallthru
        _
    $region6: #{tpu_custom_call.1} parent=1 // loop_footer
      %s17 = sadd.s32 1, %s13
    $region7: #{tpu_custom_call.1} parent=1 // loop_footer_branch
      %12 = sbr.rel target = $region3
    $region8: #{tpu_custom_call.1} parent=1 // loop_exit
      _
    %237 = vsyncpa [#allocation3], 1
    %s238 = scalar_lea.sflag [#allocation3], 1
    %239 = vsyncpa %s238, 1
    %240 = vsyncpa [#allocation4], 1
    %s241 = scalar_lea.sflag [#allocation4], 1
    %242 = vsyncpa %s241, 1

</llo_original>
